<compile_context>
chip_gen: v5e
topology: v5e:2x2
jax: 0.10.0
libtpu: 0.0.40
codegen_flags: <defaults>
</compile_context>

<pallas_src>
import math

import jax
import jax.numpy as jnp
from jax.experimental import pallas as pl
from jax.experimental.pallas import tpu as pltpu


def _round_up(x, m):
    return (x + m - 1) // m * m


def critic_kernel(xs_ref, xa_ref, w1s_ref, w1a_ref, b1_ref,
                  w2_ref, b2_ref, w3_ref, b3_ref, o_ref):
    """One batch tile of the full 3-layer MLP, entirely VMEM-resident."""
    xs = xs_ref[...].astype(jnp.bfloat16)                 # (BM, Ds)
    xa = xa_ref[...].astype(jnp.bfloat16)                 # (BM, Da)

    # Layer 1: split-weight matmul replaces the concat; f32 accumulation.
    h1 = (jnp.dot(xs, w1s_ref[...], preferred_element_type=jnp.float32)
          + jnp.dot(xa, w1a_ref[...], preferred_element_type=jnp.float32)
          + b1_ref[...])
    h1 = jnp.maximum(h1, 0.0)                             # (BM, 400) f32

    # Layer 2: bf16 MXU matmul, f32 accumulation.
    h2 = jnp.dot(h1.astype(jnp.bfloat16), w2_ref[...],
                 preferred_element_type=jnp.float32) + b2_ref[...]
    h2 = jnp.maximum(h2, 0.0)                             # (BM, 300) f32

    # Layer 3 (out_features = 1): VPU multiply + XLU reduction instead of a
    # 1-lane MXU matmul; bias comes from SMEM as a scalar.
    q = jnp.sum(h2 * w3_ref[...], axis=-1, keepdims=True) + b3_ref[0, 0]
    o_ref[...] = q.astype(o_ref.dtype)                    # (BM, 1)


def critic_forward(state, action, params, block_b=256):
    """Mirrors Critic.forward(state, action)."""
    w1s, w1a, b1, w2, b2, w3, b3 = params
    state = state.astype(jnp.float32)
    action = action.astype(jnp.float32)

    B, Ds = state.shape
    Da = action.shape[1]
    H1 = w1s.shape[1]
    H2 = w2.shape[1]

    # Batch tile: multiple of 8 (f32 sublane granularity); big tiles amortize
    # per-grid-step overhead, VMEM footprint is tiny (<1 MiB of weights).
    BM = min(block_b, _round_up(B, 8))
    Bp = _round_up(B, BM)
    if Bp != B:
        state = jnp.pad(state, ((0, Bp - B), (0, 0)))
        action = jnp.pad(action, ((0, Bp - B), (0, 0)))
    nb = Bp // BM

    out = pl.pallas_call(
        critic_kernel,
        grid=(nb,),
        in_specs=[
            pl.BlockSpec((BM, Ds), lambda i: (i, 0)),        # state tile
            pl.BlockSpec((BM, Da), lambda i: (i, 0)),        # action tile
            pl.BlockSpec((Ds, H1), lambda i: (0, 0)),        # W1_s (resident)
            pl.BlockSpec((Da, H1), lambda i: (0, 0)),        # W1_a (resident)
            pl.BlockSpec((1, H1), lambda i: (0, 0)),         # b1
            pl.BlockSpec((H1, H2), lambda i: (0, 0)),        # W2 (resident)
            pl.BlockSpec((1, H2), lambda i: (0, 0)),         # b2
            pl.BlockSpec((1, H2), lambda i: (0, 0)),         # w3 as a row
            pl.BlockSpec(memory_space=pltpu.MemorySpace.SMEM),  # b3 scalar
        ],
        out_specs=pl.BlockSpec((BM, 1), lambda i: (i, 0)),
        out_shape=jax.ShapeDtypeStruct((Bp, 1), jnp.float32),
        compiler_params=pltpu.CompilerParams(
            dimension_semantics=("parallel",),
        ),
    )(state, action, w1s, w1a, b1, w2, b2, w3, b3)

    return out[:B] if Bp != B else out


def init_critic_params(key, state_dim, action_dim):
    """nn.Linear default init U(-1/sqrt(fan_in), 1/sqrt(fan_in)).

    Storage layout chosen for the kernel:
      W1 split into W1_s (state_dim, 400) and W1_a (action_dim, 400), bf16
      W2 (400, 300) bf16
      w3 stored as a (1, 300) f32 row (VPU final layer), b3 (1, 1) f32 (SMEM)
      biases b1/b2 as (1, N) f32
    """
    h1, h2 = 400, 300
    key, k1w, k1b, k2w, k2b, k3w, k3b = jax.random.split(key, 7)

    bound1 = 1.0 / math.sqrt(state_dim + action_dim)
    w1 = jax.random.uniform(k1w, (state_dim + action_dim, h1), jnp.float32,
                            -bound1, bound1)
    b1 = jax.random.uniform(k1b, (1, h1), jnp.float32, -bound1, bound1)

    bound2 = 1.0 / math.sqrt(h1)
    w2 = jax.random.uniform(k2w, (h1, h2), jnp.float32, -bound2, bound2)
    b2 = jax.random.uniform(k2b, (1, h2), jnp.float32, -bound2, bound2)

    bound3 = 1.0 / math.sqrt(h2)
    w3 = jax.random.uniform(k3w, (h2, 1), jnp.float32, -bound3, bound3)
    b3 = jax.random.uniform(k3b, (1, 1), jnp.float32, -bound3, bound3)

    w1s = w1[:state_dim].astype(jnp.bfloat16)
    w1a = w1[state_dim:].astype(jnp.bfloat16)
    w2 = w2.astype(jnp.bfloat16)
    w3_row = jnp.transpose(w3)                  # (1, h2), f32

    return (w1s, w1a, b1, w2, b2, w3_row, b3)


if __name__ == "__main__":
    state_dim, action_dim, batch = 16, 4, 2

    key = jax.random.PRNGKey(0)
    k_params, k_state, k_action = jax.random.split(key, 3)

    params = init_critic_params(k_params, state_dim, action_dim)
    state = jax.random.normal(k_state, (batch, state_dim), jnp.float32)
    action = jax.random.normal(k_action, (batch, action_dim), jnp.float32)

    q = critic_forward(state, action, params)
    q = jax.block_until_ready(q)

    # Pure-JAX reference with the exact same bf16 quantization as the kernel.
    w1s, w1a, b1, w2, b2, w3_row, b3 = params
    w1_full = jnp.concatenate([w1s, w1a], axis=0).astype(jnp.float32)
    x = jnp.concatenate([state, action], axis=1)
    x_q = x.astype(jnp.bfloat16).astype(jnp.float32)
    h1 = jnp.maximum(x_q @ w1_full + b1, 0.0)
    h1_q = h1.astype(jnp.bfloat16).astype(jnp.float32)
    h2 = jnp.maximum(h1_q @ w2.astype(jnp.float32) + b2, 0.0)
    ref = jnp.sum(h2 * w3_row, axis=-1, keepdims=True) + b3

    assert q.shape == (batch, 1)
    assert jnp.allclose(q, ref, atol=1e-3, rtol=1e-3), "mismatch vs reference"

    print("KERNEL_OK")
</pallas_src>

<mosaic_0001>
module attributes {stable_mosaic.version = 11 : i64} {
  func.func @critic_kernel(%arg0: i32, %arg1: memref<8x16xf32, #tpu.memory_space<vmem>>, %arg2: memref<8x4xf32, #tpu.memory_space<vmem>>, %arg3: memref<16x400xbf16, #tpu.memory_space<vmem>>, %arg4: memref<4x400xbf16, #tpu.memory_space<vmem>>, %arg5: memref<1x400xf32, #tpu.memory_space<vmem>>, %arg6: memref<400x300xbf16, #tpu.memory_space<vmem>>, %arg7: memref<1x300xf32, #tpu.memory_space<vmem>>, %arg8: memref<1x300xf32, #tpu.memory_space<vmem>>, %arg9: memref<1x1xf32, #tpu.memory_space<smem>>, %arg10: memref<8x1xf32, #tpu.memory_space<vmem>>) attributes {dimension_semantics = [#tpu.dimension_semantics<parallel>], iteration_bounds = array<i64: 1>, scalar_prefetch = 0 : i64, scratch_operands = 0 : i64, tpu.core_type = #tpu.core_type<tc>, window_params = [{transform_indices = @transform_0, window_bounds = array<i64: 8, 16>}, {transform_indices = @transform_1, window_bounds = array<i64: 8, 4>}, {pipeline_mode = #tpu.pipeline_mode<synchronous>, transform_indices = @transform_2, window_bounds = array<i64: 16, 400>}, {pipeline_mode = #tpu.pipeline_mode<synchronous>, transform_indices = @transform_3, window_bounds = array<i64: 4, 400>}, {pipeline_mode = #tpu.pipeline_mode<synchronous>, transform_indices = @transform_4, window_bounds = array<i64: 1, 400>}, {pipeline_mode = #tpu.pipeline_mode<synchronous>, transform_indices = @transform_5, window_bounds = array<i64: 400, 300>}, {pipeline_mode = #tpu.pipeline_mode<synchronous>, transform_indices = @transform_6, window_bounds = array<i64: 1, 300>}, {pipeline_mode = #tpu.pipeline_mode<synchronous>, transform_indices = @transform_7, window_bounds = array<i64: 1, 300>}, {transform_indices = @transform_8, window_bounds = array<i64: 1, 1>}, {transform_indices = @transform_9, window_bounds = array<i64: 8, 1>}]} {
    %c0 = arith.constant 0 : index
    %c0_0 = arith.constant 0 : index
    %0 = vector.load %arg1[%c0, %c0_0] : memref<8x16xf32, #tpu.memory_space<vmem>>, vector<8x16xf32>
    %1 = arith.truncf %0 : vector<8x16xf32> to vector<8x16xbf16>
    %c0_1 = arith.constant 0 : index
    %c0_2 = arith.constant 0 : index
    %2 = vector.load %arg2[%c0_1, %c0_2] : memref<8x4xf32, #tpu.memory_space<vmem>>, vector<8x4xf32>
    %3 = arith.truncf %2 : vector<8x4xf32> to vector<8x4xbf16>
    %c0_3 = arith.constant 0 : index
    %c0_4 = arith.constant 0 : index
    %4 = vector.load %arg3[%c0_3, %c0_4] : memref<16x400xbf16, #tpu.memory_space<vmem>>, vector<16x400xbf16>
    %cst = arith.constant dense<0.000000e+00> : vector<8x400xf32>
    %5 = tpu.matmul %1, %4, %cst {dimension_numbers = #tpu.dot_dimension_numbers<[1], [0], [0], [1], [0, 0, 1, 1], [], []>} : vector<8x16xbf16>, vector<16x400xbf16>, vector<8x400xf32> -> vector<8x400xf32>
    %c0_5 = arith.constant 0 : index
    %c0_6 = arith.constant 0 : index
    %6 = vector.load %arg4[%c0_5, %c0_6] : memref<4x400xbf16, #tpu.memory_space<vmem>>, vector<4x400xbf16>
    %cst_7 = arith.constant dense<0.000000e+00> : vector<8x400xf32>
    %7 = tpu.matmul %3, %6, %cst_7 {dimension_numbers = #tpu.dot_dimension_numbers<[1], [0], [0], [1], [0, 0, 1, 1], [], []>} : vector<8x4xbf16>, vector<4x400xbf16>, vector<8x400xf32> -> vector<8x400xf32>
    %8 = arith.addf %5, %7 : vector<8x400xf32>
    %c0_8 = arith.constant 0 : index
    %c0_9 = arith.constant 0 : index
    %9 = vector.load %arg5[%c0_8, %c0_9] : memref<1x400xf32, #tpu.memory_space<vmem>>, vector<1x400xf32>
    %10 = vector.broadcast %9 : vector<1x400xf32> to vector<8x400xf32>
    %11 = arith.addf %8, %10 : vector<8x400xf32>
    %cst_10 = arith.constant 0.000000e+00 : f32
    %12 = vector.broadcast %cst_10 : f32 to vector<8x400xf32>
    %13 = arith.maximumf %11, %12 : vector<8x400xf32>
    %14 = arith.truncf %13 : vector<8x400xf32> to vector<8x400xbf16>
    %c0_11 = arith.constant 0 : index
    %c0_12 = arith.constant 0 : index
    %15 = vector.load %arg6[%c0_11, %c0_12] : memref<400x300xbf16, #tpu.memory_space<vmem>>, vector<400x300xbf16>
    %cst_13 = arith.constant dense<0.000000e+00> : vector<8x300xf32>
    %16 = tpu.matmul %14, %15, %cst_13 {dimension_numbers = #tpu.dot_dimension_numbers<[1], [0], [0], [1], [0, 0, 1, 1], [], []>} : vector<8x400xbf16>, vector<400x300xbf16>, vector<8x300xf32> -> vector<8x300xf32>
    %c0_14 = arith.constant 0 : index
    %c0_15 = arith.constant 0 : index
    %17 = vector.load %arg7[%c0_14, %c0_15] : memref<1x300xf32, #tpu.memory_space<vmem>>, vector<1x300xf32>
    %18 = vector.broadcast %17 : vector<1x300xf32> to vector<8x300xf32>
    %19 = arith.addf %16, %18 : vector<8x300xf32>
    %cst_16 = arith.constant 0.000000e+00 : f32
    %20 = vector.broadcast %cst_16 : f32 to vector<8x300xf32>
    %21 = arith.maximumf %19, %20 : vector<8x300xf32>
    %c0_17 = arith.constant 0 : index
    %c0_18 = arith.constant 0 : index
    %22 = vector.load %arg8[%c0_17, %c0_18] : memref<1x300xf32, #tpu.memory_space<vmem>>, vector<1x300xf32>
    %23 = vector.broadcast %22 : vector<1x300xf32> to vector<8x300xf32>
    %24 = arith.mulf %21, %23 : vector<8x300xf32>
    %cst_19 = arith.constant dense<0.000000e+00> : vector<8xf32>
    %25 = vector.multi_reduction <add>, %24, %cst_19 [1] : vector<8x300xf32> to vector<8xf32>
    %26 = vector.shape_cast %25 : vector<8xf32> to vector<8x1xf32>
    %c0_20 = arith.constant 0 : index
    %c0_21 = arith.constant 0 : index
    %27 = memref.load %arg9[%c0_20, %c0_21] : memref<1x1xf32, #tpu.memory_space<smem>>
    %28 = vector.broadcast %27 : f32 to vector<8x1xf32>
    %29 = arith.addf %26, %28 : vector<8x1xf32>
    %c0_22 = arith.constant 0 : index
    %c0_23 = arith.constant 0 : index
    %30 = vector.load %arg10[%c0_22, %c0_23] : memref<8x1xf32, #tpu.memory_space<vmem>>, vector<8x1xf32>
    tpu.vector_store %arg10[%c0_22, %c0_23], %29 {strides = array<i32>} : memref<8x1xf32, #tpu.memory_space<vmem>>, vector<8x1xf32>,
    return
  }
  func.func @transform_0(%arg0: i32) -> (i32, i32) {
    %c0_i32 = arith.constant 0 : i32
    %c0_i32_0 = arith.constant 0 : i32
    return %arg0, %c0_i32 : i32, i32
  }
  func.func @transform_1(%arg0: i32) -> (i32, i32) {
    %c0_i32 = arith.constant 0 : i32
    %c0_i32_0 = arith.constant 0 : i32
    return %arg0, %c0_i32 : i32, i32
  }
  func.func @transform_2(%arg0: i32) -> (i32, i32) {
    %c0_i32 = arith.constant 0 : i32
    %c0_i32_0 = arith.constant 0 : i32
    %c0_i32_1 = arith.constant 0 : i32
    return %c0_i32, %c0_i32_0 : i32, i32
  }
  func.func @transform_3(%arg0: i32) -> (i32, i32) {
    %c0_i32 = arith.constant 0 : i32
    %c0_i32_0 = arith.constant 0 : i32
    %c0_i32_1 = arith.constant 0 : i32
    return %c0_i32, %c0_i32_0 : i32, i32
  }
  func.func @transform_4(%arg0: i32) -> (i32, i32) {
    %c0_i32 = arith.constant 0 : i32
    %c0_i32_0 = arith.constant 0 : i32
    %c0_i32_1 = arith.constant 0 : i32
    return %c0_i32, %c0_i32_0 : i32, i32
  }
  func.func @transform_5(%arg0: i32) -> (i32, i32) {
    %c0_i32 = arith.constant 0 : i32
    %c0_i32_0 = arith.constant 0 : i32
    %c0_i32_1 = arith.constant 0 : i32
    return %c0_i32, %c0_i32_0 : i32, i32
  }
  func.func @transform_6(%arg0: i32) -> (i32, i32) {
    %c0_i32 = arith.constant 0 : i32
    %c0_i32_0 = arith.constant 0 : i32
    %c0_i32_1 = arith.constant 0 : i32
    return %c0_i32, %c0_i32_0 : i32, i32
  }
  func.func @transform_7(%arg0: i32) -> (i32, i32) {
    %c0_i32 = arith.constant 0 : i32
    %c0_i32_0 = arith.constant 0 : i32
    %c0_i32_1 = arith.constant 0 : i32
    return %c0_i32, %c0_i32_0 : i32, i32
  }
  func.func @transform_8(%arg0: i32) -> (i32, i32) {
    %c0_i32 = arith.constant 0 : i32
    %c0_i32_0 = arith.constant 0 : i32
    %c0_i32_1 = arith.constant 0 : i32
    return %c0_i32, %c0_i32_0 : i32, i32
  }
  func.func @transform_9(%arg0: i32) -> (i32, i32) {
    %c0_i32 = arith.constant 0 : i32
    %c0_i32_0 = arith.constant 0 : i32
    return %arg0, %c0_i32 : i32, i32
  }
}

</mosaic_0001>

<llo_original>
// kernel: tpu_custom_call.1
$region0: #{tpu_custom_call.1}
  #allocation0 [shape = 'u32[]', space=smem, size = 0x4, offset = 0x4, fixed_abs, tag = 'smem constant byte address 0x4 - core index']
  #allocation1 [shape = 'u32[72,128]{1,0:T(1,128)}', space=vmem, size = 0x9000, scoped, tag = 'internal scratch']
  #allocation2 [shape = 'f32[1,1]{1,0:T(1,128)S(6)}', space=smem, size = 0x200, scoped, tag = 'scoped memory for tpu_custom_call.1']
  %s0 = inlined_call_operand.vmem [shape: f32[8,16], index: 0, kind: input, shape index: {}]
  %s1 = inlined_call_operand.vmem [shape: f32[8,4], index: 1, kind: input, shape index: {}]
  %s2 = inlined_call_operand.hbm [shape: bf16[16,400], index: 2, kind: input, shape index: {}]
  %s3 = inlined_call_operand.vmem [shape: bf16[4,400], index: 3, kind: input, shape index: {}]
  %s4 = inlined_call_operand.hbm [shape: f32[1,400], index: 4, kind: input, shape index: {}]
  %s5 = inlined_call_operand.hbm [shape: bf16[400,300], index: 5, kind: input, shape index: {}]
  %s6 = inlined_call_operand.vmem [shape: f32[1,300], index: 6, kind: input, shape index: {}]
  %s7 = inlined_call_operand.hbm [shape: f32[1,300], index: 7, kind: input, shape index: {}]
  %s8 = inlined_call_operand.<no memory space> [shape: f32[1,1], index: 8, kind: input, shape index: {}]
  %s9 = inlined_call_operand.vmem [shape: f32[8,1], index: 9, kind: output, shape index: {}]
  %s10 = sld [smem:[#allocation0]]
  $region62: #{tpu_custom_call.1} parent=0
    _
  %s12 = ssub.s32 1, %s10
  %s13 = scalar_select 0, %s12, %s10
  %14 = sst [smem:[#allocation2]] %s8
  $region1: #{tpu_custom_call.1} parent=0
    #allocation3 [shape = 'u8[16384]{0}', space=vmem, size = 0x4000, scoped, tag = 'input window, operand 2, single buffered']
    #allocation4 [shape = 's32[1]{0}', space=sflag, size = 0x4, scoped, tag = 'scoped memory for tpu_custom_call.1']
    #allocation5 [shape = 'u8[2048]{0}', space=vmem, size = 0x800, scoped, tag = 'input window, operand 4, single buffered']
    #allocation6 [shape = 's32[1]{0}', space=sflag, size = 0x4, scoped, tag = 'scoped memory for tpu_custom_call.1']
    #allocation7 [shape = 'u8[307200]{0}', space=vmem, size = 0x4b000, scoped, tag = 'input window, operand 5, single buffered']
    #allocation8 [shape = 'u8[1536]{0}', space=vmem, size = 0x800, scoped, tag = 'input window, operand 7, single buffered']
    #allocation9 [shape = 's32[1]{0}', space=sflag, size = 0x4, scoped, tag = 'scoped memory for tpu_custom_call.1']
    %15 = vsyncpa [#allocation4], 0
    %16 = vsyncpa [#allocation6], 0
    %17 = vsyncpa [#allocation9], 0
    // Predicated region
    $region2: #{tpu_custom_call.1} parent=1 // pred_check
      _
    $region3: #{tpu_custom_call.1} parent=1 // pred_check_branch
      %19 = sbr.rel (0) target = $region5
    $region4: #{tpu_custom_call.1} parent=1 // pred_region
      _
    $region5: #{tpu_custom_call.1} parent=1 // pred_fallthru
      _
    // Predicated region
    $region6: #{tpu_custom_call.1} parent=1 // pred_check
      _
    $region7: #{tpu_custom_call.1} parent=1 // pred_check_branch
      %21 = sbr.rel (0) target = $region9
    $region8: #{tpu_custom_call.1} parent=1 // pred_region
      _
    $region9: #{tpu_custom_call.1} parent=1 // pred_fallthru
      _
    // Predicated region
    $region10: #{tpu_custom_call.1} parent=1 // pred_check
      _
    $region11: #{tpu_custom_call.1} parent=1 // pred_check_branch
      %23 = sbr.rel (0) target = $region13
    $region12: #{tpu_custom_call.1} parent=1 // pred_region
      %25 = vsyncadd [#allocation4], 0
      %s26 = sshll.u32 %s2, 4
      %s27 = int_to_ptr.hbm [resolvable:$true] %s26
      %s28 = sshll.u32 [#allocation3], 4
      %s29 = int_to_ptr.vmem [resolvable:$true] %s28
      %34 = dma.hbm_to_vmem [thread:$0]  %s27, 512, %s29, [#allocation4], 256, 256, 16
    $region13: #{tpu_custom_call.1} parent=1 // pred_fallthru
      _
    // Predicated region
    $region14: #{tpu_custom_call.1} parent=1 // pred_check
      _
    $region15: #{tpu_custom_call.1} parent=1 // pred_check_branch
      %36 = sbr.rel (0) target = $region17
    $region16: #{tpu_custom_call.1} parent=1 // pred_region
      _
    $region17: #{tpu_custom_call.1} parent=1 // pred_fallthru
      _
    // Predicated region
    $region18: #{tpu_custom_call.1} parent=1 // pred_check
      _
    $region19: #{tpu_custom_call.1} parent=1 // pred_check_branch
      %38 = sbr.rel (0) target = $region21
    $region20: #{tpu_custom_call.1} parent=1 // pred_region
      %40 = vsyncadd [#allocation6], 0
      %s42 = sshll.u32 %s4, 4
      %s43 = int_to_ptr.hbm [resolvable:$true] %s42
      %s44 = sshll.u32 [#allocation5], 4
      %s45 = int_to_ptr.vmem [resolvable:$true] %s44
      %47 = dma.hbm_to_vmem [thread:$0]  %s43, 64, %s45, [#allocation6]
    $region21: #{tpu_custom_call.1} parent=1 // pred_fallthru
      _
    // Predicated region
    $region22: #{tpu_custom_call.1} parent=1 // pred_check
      _
    $region23: #{tpu_custom_call.1} parent=1 // pred_check_branch
      %49 = sbr.rel (0) target = $region25
    $region24: #{tpu_custom_call.1} parent=1 // pred_region
      %51 = vsyncadd [#allocation6], 0
      %s52 = sshll.u32 %s5, 4
      %s53 = int_to_ptr.hbm [resolvable:$true] %s52
      %s54 = sshll.u32 [#allocation7], 4
      %s55 = int_to_ptr.vmem [resolvable:$true] %s54
      %60 = dma.hbm_to_vmem [thread:$0]  %s53, 9600, %s55, [#allocation6], 192, 192, 12
    $region25: #{tpu_custom_call.1} parent=1 // pred_fallthru
      _
    // Predicated region
    $region26: #{tpu_custom_call.1} parent=1 // pred_check
      _
    $region27: #{tpu_custom_call.1} parent=1 // pred_check_branch
      %62 = sbr.rel (0) target = $region29
    $region28: #{tpu_custom_call.1} parent=1 // pred_region
      _
    $region29: #{tpu_custom_call.1} parent=1 // pred_fallthru
      _
    // Predicated region
    $region30: #{tpu_custom_call.1} parent=1 // pred_check
      _
    $region31: #{tpu_custom_call.1} parent=1 // pred_check_branch
      %64 = sbr.rel (0) target = $region33
    $region32: #{tpu_custom_call.1} parent=1 // pred_region
      %66 = vsyncadd [#allocation9], 0
      %s68 = sshll.u32 %s7, 4
      %s69 = int_to_ptr.hbm [resolvable:$true] %s68
      %s70 = sshll.u32 [#allocation8], 4
      %s71 = int_to_ptr.vmem [resolvable:$true] %s70
      %73 = dma.hbm_to_vmem [thread:$0]  %s69, 48, %s71, [#allocation9]
    $region33: #{tpu_custom_call.1} parent=1 // pred_fallthru
      _
    // Predicated region
    $region34: #{tpu_custom_call.1} parent=1 // pred_check
      _
    $region35: #{tpu_custom_call.1} parent=1 // pred_check_branch
      %75 = sbr.rel (0) target = $region37
    $region36: #{tpu_custom_call.1} parent=1 // pred_region
      _
    $region37: #{tpu_custom_call.1} parent=1 // pred_fallthru
      _
    // Predicated region
    $region38: #{tpu_custom_call.1} parent=1 // pred_check
      _
    $region39: #{tpu_custom_call.1} parent=1 // pred_check_branch
      %77 = sbr.rel (0) target = $region41
    $region40: #{tpu_custom_call.1} parent=1 // pred_region
      %79 = dma.done [#allocation4], 512
    $region41: #{tpu_custom_call.1} parent=1 // pred_fallthru
      _
    // Predicated region
    $region42: #{tpu_custom_call.1} parent=1 // pred_check
      _
    $region43: #{tpu_custom_call.1} parent=1 // pred_check_branch
      %81 = sbr.rel (0) target = $region45
    $region44: #{tpu_custom_call.1} parent=1 // pred_region
      %83 = dma.done [#allocation6], 64
    $region45: #{tpu_custom_call.1} parent=1 // pred_fallthru
      _
    // Predicated region
    $region46: #{tpu_custom_call.1} parent=1 // pred_check
      _
    $region47: #{tpu_custom_call.1} parent=1 // pred_check_branch
      %85 = sbr.rel (0) target = $region49
    $region48: #{tpu_custom_call.1} parent=1 // pred_region
      %87 = dma.done [#allocation6], 9600
    $region49: #{tpu_custom_call.1} parent=1 // pred_fallthru
      _
    // Predicated region
    $region50: #{tpu_custom_call.1} parent=1 // pred_check
      _
    $region51: #{tpu_custom_call.1} parent=1 // pred_check_branch
      %89 = sbr.rel (0) target = $region53
    $region52: #{tpu_custom_call.1} parent=1 // pred_region
      %91 = dma.done [#allocation9], 48
    $region53: #{tpu_custom_call.1} parent=1 // pred_fallthru
      _
    %v93 = vld [vmem:[%s0] sm:$0xff]
    %v94 = vpack.c.bf16 %v93, %v93
    %v95 = vld [vmem:[%s1] sm:$0xff]
    %v96 = vpack.c.bf16 %v95, %v95
    %v97 = vld [vmem:[#allocation3] sm:$0xff]
    %v98 = vld [vmem:[#allocation3 + $0x8] sm:$0xff]
    %v99 = vld [vmem:[#allocation3 + $0x10] sm:$0xff]
    %v100 = vld [vmem:[#allocation3 + $0x18] sm:$0xff]
    %v101 = vld [vmem:[%s3] sm:$0xff]
    %103 = vst [vmem:[#allocation1] ss:$4 sm:$0xff] %v101
    %v104 = vld.sshfl [vmem:[#allocation1] sm:$0xff pattern:$0x73625140]
    %v105 = vld.sshfl [vmem:[#allocation1 + $0x8] sm:$0xff pattern:$0x73625140]
    %v106 = vld.sshfl [vmem:[#allocation1 + $0x10] sm:$0xff pattern:$0x73625140]
    %v107 = vld.sshfl [vmem:[#allocation1 + $0x18] sm:$0xff pattern:$0x73625140]
    %vm108 = vcmask 31744
    %v110 = vsel %vm108, %v96, 0
    %vm112 = vcmask 1041408
    %v113 = vsel %vm112, %v104, 0
    %v115 = vsel %vm112, %v105, 0
    %v117 = vsel %vm112, %v106, 0
    %v119 = vsel %vm112, %v107, 0
    %121 = vmatpush.bf16.msra.mxu0 0
    %122 = vmatpush.bf16.msra.mxu0 0
    %123 = vmatpush.bf16.msra.mxu0 0
    %124 = vmatpush.bf16.msra.mxu0 0
    %125 = vmatpush.bf16.msra.mxu0 0
    %126 = vmatpush.bf16.msra.mxu0 0
    %127 = vmatpush.bf16.msra.mxu0 0
    %128 = vmatpush.bf16.msra.mxu0 %v113
    %129 = vmatmul.bf16.gmra.mxu0 %v110
    %v130 = vpop.f32.mrf.mxu0
    %v131 = vadd.f32 0.0, %v130
    %v132 = vpop.f32.mrf.mxu0
    %133 = vdwg.mxu0
    %134 = vmatpush.bf16.msra.mxu0 0
    %135 = vmatpush.bf16.msra.mxu0 0
    %136 = vmatpush.bf16.msra.mxu0 0
    %137 = vmatpush.bf16.msra.mxu0 0
    %138 = vmatpush.bf16.msra.mxu0 0
    %139 = vmatpush.bf16.msra.mxu0 0
    %140 = vmatpush.bf16.msra.mxu0 0
    %141 = vmatpush.bf16.msra.mxu0 %v115
    %142 = vmatmul.bf16.gmra.mxu0 %v110
    %v143 = vpop.f32.mrf.mxu0
    %v144 = vadd.f32 0.0, %v143
    %v145 = vpop.f32.mrf.mxu0
    %146 = vdwg.mxu0
    %147 = vmatpush.bf16.msra.mxu0 0
    %148 = vmatpush.bf16.msra.mxu0 0
    %149 = vmatpush.bf16.msra.mxu0 0
    %150 = vmatpush.bf16.msra.mxu0 0
    %151 = vmatpush.bf16.msra.mxu0 0
    %152 = vmatpush.bf16.msra.mxu0 0
    %153 = vmatpush.bf16.msra.mxu0 0
    %154 = vmatpush.bf16.msra.mxu0 %v117
    %155 = vmatmul.bf16.gmra.mxu0 %v110
    %v156 = vpop.f32.mrf.mxu0
    %v157 = vadd.f32 0.0, %v156
    %v158 = vpop.f32.mrf.mxu0
    %159 = vdwg.mxu0
    %160 = vmatpush.bf16.msra.mxu0 0
    %161 = vmatpush.bf16.msra.mxu0 0
    %162 = vmatpush.bf16.msra.mxu0 0
    %163 = vmatpush.bf16.msra.mxu0 0
    %164 = vmatpush.bf16.msra.mxu0 0
    %165 = vmatpush.bf16.msra.mxu0 0
    %166 = vmatpush.bf16.msra.mxu0 0
    %167 = vmatpush.bf16.msra.mxu0 %v119
    %168 = vmatmul.bf16.gmra.mxu0 %v110
    %v169 = vpop.f32.mrf.mxu0
    %v170 = vadd.f32 0.0, %v169
    %v171 = vpop.f32.mrf.mxu0
    %172 = vdwg.mxu0
    %v177 = vunpack.c.l.b16 %v97
    %v178 = vunpack.c.h.b16 %v97
    %v179 = vunpack.c.l.b16 %v98
    %v180 = vunpack.c.h.b16 %v98
    %v181 = vunpack.c.l.b16 %v99
    %v182 = vunpack.c.h.b16 %v99
    %v183 = vunpack.c.l.b16 %v100
    %v184 = vunpack.c.h.b16 %v100
    %v185 = vpack.c.b16 %v181, %v177
    %v186 = vpack.c.b16 %v182, %v178
    %v187 = vpack.c.b16 %v183, %v179
    %v188 = vpack.c.b16 %v184, %v180
    %vm193 = vcmask 130048
    %v195 = vsel %vm193, %v94, 0
    %197 = vmatpush.bf16.msra.mxu0 0
    %198 = vmatpush.bf16.msra.mxu0 0
    %199 = vmatpush.bf16.msra.mxu0 0
    %200 = vmatpush.bf16.msra.mxu0 0
    %201 = vmatpush.bf16.msra.mxu0 0
    %202 = vmatpush.bf16.msra.mxu0 0
    %203 = vmatpush.bf16.msra.mxu0 0
    %204 = vmatpush.bf16.msra.mxu0 %v185
    %205 = vmatmul.bf16.gmra.mxu0 %v195
    %v206 = vpop.f32.mrf.mxu0
    %v207 = vadd.f32 %v131, %v206
    %v208 = vpop.f32.mrf.mxu0
    %209 = vdwg.mxu0
    %210 = vmatpush.bf16.msra.mxu0 0
    %211 = vmatpush.bf16.msra.mxu0 0
    %212 = vmatpush.bf16.msra.mxu0 0
    %213 = vmatpush.bf16.msra.mxu0 0
    %214 = vmatpush.bf16.msra.mxu0 0
    %215 = vmatpush.bf16.msra.mxu0 0
    %216 = vmatpush.bf16.msra.mxu0 0
    %217 = vmatpush.bf16.msra.mxu0 %v186
    %218 = vmatmul.bf16.gmra.mxu0 %v195
    %v219 = vpop.f32.mrf.mxu0
    %v220 = vadd.f32 %v144, %v219
    %v221 = vpop.f32.mrf.mxu0
    %222 = vdwg.mxu0
    %223 = vmatpush.bf16.msra.mxu0 0
    %224 = vmatpush.bf16.msra.mxu0 0
    %225 = vmatpush.bf16.msra.mxu0 0
    %226 = vmatpush.bf16.msra.mxu0 0
    %227 = vmatpush.bf16.msra.mxu0 0
    %228 = vmatpush.bf16.msra.mxu0 0
    %229 = vmatpush.bf16.msra.mxu0 0
    %230 = vmatpush.bf16.msra.mxu0 %v187
    %231 = vmatmul.bf16.gmra.mxu0 %v195
    %v232 = vpop.f32.mrf.mxu0
    %v233 = vadd.f32 %v157, %v232
    %v234 = vpop.f32.mrf.mxu0
    %235 = vdwg.mxu0
    %236 = vmatpush.bf16.msra.mxu0 0
    %237 = vmatpush.bf16.msra.mxu0 0
    %238 = vmatpush.bf16.msra.mxu0 0
    %239 = vmatpush.bf16.msra.mxu0 0
    %240 = vmatpush.bf16.msra.mxu0 0
    %241 = vmatpush.bf16.msra.mxu0 0
    %242 = vmatpush.bf16.msra.mxu0 0
    %243 = vmatpush.bf16.msra.mxu0 %v188
    %244 = vmatmul.bf16.gmra.mxu0 %v195
    %v245 = vpop.f32.mrf.mxu0
    %v246 = vadd.f32 %v170, %v245
    %v247 = vpop.f32.mrf.mxu0
    %248 = vdwg.mxu0
    %v249 = vld [vmem:[#allocation5] sm:$0xf]
    %v251 = vperm.slane %v249, 0
    %v252 = vperm.slane %v249, 1
    %v253 = vperm.slane %v249, 2
    %v254 = vperm.slane %v249, 3
    %v259 = vadd.f32 %v207, %v251
    %v260 = vadd.f32 %v220, %v252
    %v261 = vadd.f32 %v233, %v253
    %v262 = vadd.f32 %v246, %v254
    %v263 = vmax.f32 %v259, 0.0
    %v264 = vmax.f32 %v260, 0.0
    %v265 = vmax.f32 %v261, 0.0
    %v266 = vmax.f32 %v262, 0.0
    %v267 = vpack.c.bf16 %v263, %v263
    %v268 = vpack.c.bf16 %v264, %v264
    %v269 = vpack.c.bf16 %v265, %v265
    %v270 = vpack.c.bf16 %v266, %v266
    %v271 = vld [vmem:[#allocation7] sm:$0xff]
    %v272 = vld [vmem:[#allocation7 + $0x8] sm:$0xf]
    %v273 = vld [vmem:[#allocation7 + $0xc] sm:$0xff]
    %v274 = vld [vmem:[#allocation7 + $0x14] sm:$0xf]
    %v275 = vld [vmem:[#allocation7 + $0x18] sm:$0xff]
    %v276 = vld [vmem:[#allocation7 + $0x20] sm:$0xf]
    %v277 = vld [vmem:[#allocation7 + $0x24] sm:$0xff]
    %v278 = vld [vmem:[#allocation7 + $0x2c] sm:$0xf]
    %v279 = vld [vmem:[#allocation7 + $0x30] sm:$0xff]
    %v280 = vld [vmem:[#allocation7 + $0x38] sm:$0xf]
    %v281 = vld [vmem:[#allocation7 + $0x3c] sm:$0xff]
    %v282 = vld [vmem:[#allocation7 + $0x44] sm:$0xf]
    %v283 = vld [vmem:[#allocation7 + $0x48] sm:$0xff]
    %v284 = vld [vmem:[#allocation7 + $0x50] sm:$0xf]
    %v285 = vld [vmem:[#allocation7 + $0x54] sm:$0xff]
    %v286 = vld [vmem:[#allocation7 + $0x5c] sm:$0xf]
    %v287 = vld [vmem:[#allocation7 + $0x60] sm:$0xff]
    %v288 = vld [vmem:[#allocation7 + $0x68] sm:$0xf]
    %v289 = vld [vmem:[#allocation7 + $0x6c] sm:$0xff]
    %v290 = vld [vmem:[#allocation7 + $0x74] sm:$0xf]
    %v291 = vld [vmem:[#allocation7 + $0x78] sm:$0xff]
    %v292 = vld [vmem:[#allocation7 + $0x80] sm:$0xf]
    %v293 = vld [vmem:[#allocation7 + $0x84] sm:$0xff]
    %v294 = vld [vmem:[#allocation7 + $0x8c] sm:$0xf]
    %v295 = vld [vmem:[#allocation7 + $0x90] sm:$0xff]
    %v296 = vld [vmem:[#allocation7 + $0x98] sm:$0xf]
    %v297 = vld [vmem:[#allocation7 + $0x9c] sm:$0xff]
    %v298 = vld [vmem:[#allocation7 + $0xa4] sm:$0xf]
    %v299 = vld [vmem:[#allocation7 + $0xa8] sm:$0xff]
    %v300 = vld [vmem:[#allocation7 + $0xb0] sm:$0xf]
    %v301 = vld [vmem:[#allocation7 + $0xb4] sm:$0xff]
    %v302 = vld [vmem:[#allocation7 + $0xbc] sm:$0xf]
    %v303 = vld [vmem:[#allocation7 + $0xc0] sm:$0xff]
    %v304 = vld [vmem:[#allocation7 + $0xc8] sm:$0xf]
    %v305 = vld [vmem:[#allocation7 + $0xcc] sm:$0xff]
    %v306 = vld [vmem:[#allocation7 + $0xd4] sm:$0xf]
    %v307 = vld [vmem:[#allocation7 + $0xd8] sm:$0xff]
    %v308 = vld [vmem:[#allocation7 + $0xe0] sm:$0xf]
    %v309 = vld [vmem:[#allocation7 + $0xe4] sm:$0xff]
    %v310 = vld [vmem:[#allocation7 + $0xec] sm:$0xf]
    %v311 = vld [vmem:[#allocation7 + $0xf0] sm:$0xff]
    %v312 = vld [vmem:[#allocation7 + $0xf8] sm:$0xf]
    %v313 = vld [vmem:[#allocation7 + $0xfc] sm:$0xff]
    %v314 = vld [vmem:[#allocation7 + $0x104] sm:$0xf]
    %v315 = vld [vmem:[#allocation7 + $0x108] sm:$0xff]
    %v316 = vld [vmem:[#allocation7 + $0x110] sm:$0xf]
    %v317 = vld [vmem:[#allocation7 + $0x114] sm:$0xff]
    %v318 = vld [vmem:[#allocation7 + $0x11c] sm:$0xf]
    %v319 = vld [vmem:[#allocation7 + $0x120] sm:$0xff]
    %v320 = vld [vmem:[#allocation7 + $0x128] sm:$0xf]
    %v321 = vld [vmem:[#allocation7 + $0x12c] sm:$0xff]
    %v322 = vld [vmem:[#allocation7 + $0x134] sm:$0xf]
    %v323 = vld [vmem:[#allocation7 + $0x138] sm:$0xff]
    %v324 = vld [vmem:[#allocation7 + $0x140] sm:$0xf]
    %v325 = vld [vmem:[#allocation7 + $0x144] sm:$0xff]
    %v326 = vld [vmem:[#allocation7 + $0x14c] sm:$0xf]
    %v327 = vld [vmem:[#allocation7 + $0x150] sm:$0xff]
    %v328 = vld [vmem:[#allocation7 + $0x158] sm:$0xf]
    %v329 = vld [vmem:[#allocation7 + $0x15c] sm:$0xff]
    %v330 = vld [vmem:[#allocation7 + $0x164] sm:$0xf]
    %v331 = vld [vmem:[#allocation7 + $0x168] sm:$0xff]
    %v332 = vld [vmem:[#allocation7 + $0x170] sm:$0xf]
    %v333 = vld [vmem:[#allocation7 + $0x174] sm:$0xff]
    %v334 = vld [vmem:[#allocation7 + $0x17c] sm:$0xf]
    %v335 = vld [vmem:[#allocation7 + $0x180] sm:$0xff]
    %v336 = vld [vmem:[#allocation7 + $0x188] sm:$0xf]
    %v337 = vld [vmem:[#allocation7 + $0x18c] sm:$0xff]
    %v338 = vld [vmem:[#allocation7 + $0x194] sm:$0xf]
    %v339 = vld [vmem:[#allocation7 + $0x198] sm:$0xff]
    %v340 = vld [vmem:[#allocation7 + $0x1a0] sm:$0xf]
    %v341 = vld [vmem:[#allocation7 + $0x1a4] sm:$0xff]
    %v342 = vld [vmem:[#allocation7 + $0x1ac] sm:$0xf]
    %v343 = vld [vmem:[#allocation7 + $0x1b0] sm:$0xff]
    %v344 = vld [vmem:[#allocation7 + $0x1b8] sm:$0xf]
    %v345 = vld [vmem:[#allocation7 + $0x1bc] sm:$0xff]
    %v346 = vld [vmem:[#allocation7 + $0x1c4] sm:$0xf]
    %v347 = vld [vmem:[#allocation7 + $0x1c8] sm:$0xff]
    %v348 = vld [vmem:[#allocation7 + $0x1d0] sm:$0xf]
    %v349 = vld [vmem:[#allocation7 + $0x1d4] sm:$0xff]
    %v350 = vld [vmem:[#allocation7 + $0x1dc] sm:$0xf]
    %v351 = vld [vmem:[#allocation7 + $0x1e0] sm:$0xff]
    %v352 = vld [vmem:[#allocation7 + $0x1e8] sm:$0xf]
    %v353 = vld [vmem:[#allocation7 + $0x1ec] sm:$0xff]
    %v354 = vld [vmem:[#allocation7 + $0x1f4] sm:$0xf]
    %v355 = vld [vmem:[#allocation7 + $0x1f8] sm:$0xff]
    %v356 = vld [vmem:[#allocation7 + $0x200] sm:$0xf]
    %v357 = vld [vmem:[#allocation7 + $0x204] sm:$0xff]
    %v358 = vld [vmem:[#allocation7 + $0x20c] sm:$0xf]
    %v359 = vld [vmem:[#allocation7 + $0x210] sm:$0xff]
    %v360 = vld [vmem:[#allocation7 + $0x218] sm:$0xf]
    %v361 = vld [vmem:[#allocation7 + $0x21c] sm:$0xff]
    %v362 = vld [vmem:[#allocation7 + $0x224] sm:$0xf]
    %v363 = vld [vmem:[#allocation7 + $0x228] sm:$0xff]
    %v364 = vld [vmem:[#allocation7 + $0x230] sm:$0xf]
    %v365 = vld [vmem:[#allocation7 + $0x234] sm:$0xff]
    %v366 = vld [vmem:[#allocation7 + $0x23c] sm:$0xf]
    %v367 = vld [vmem:[#allocation7 + $0x240] sm:$0xff]
    %v368 = vld [vmem:[#allocation7 + $0x248] sm:$0xf]
    %v369 = vld [vmem:[#allocation7 + $0x24c] sm:$0xff]
    %v370 = vld [vmem:[#allocation7 + $0x254] sm:$0xf]
    %v371 = vld [vmem:[%s6] sm:$0x7]
    %v373 = vperm.slane %v371, 0
    %v374 = vperm.slane %v371, 1
    %v375 = vperm.slane %v371, 2
    %v479 = vunpack.c.l.b16 %v271
    %v480 = vunpack.c.h.b16 %v271
    %v481 = vunpack.c.l.b16 %v272
    %v482 = vunpack.c.l.b16 %v273
    %v483 = vunpack.c.h.b16 %v273
    %v484 = vunpack.c.l.b16 %v274
    %v485 = vunpack.c.l.b16 %v275
    %v486 = vunpack.c.h.b16 %v275
    %v487 = vunpack.c.l.b16 %v276
    %v488 = vunpack.c.l.b16 %v277
    %v489 = vunpack.c.h.b16 %v277
    %v490 = vunpack.c.l.b16 %v278
    %v491 = vunpack.c.l.b16 %v279
    %v492 = vunpack.c.h.b16 %v279
    %v493 = vunpack.c.l.b16 %v280
    %v494 = vunpack.c.l.b16 %v281
    %v495 = vunpack.c.h.b16 %v281
    %v496 = vunpack.c.l.b16 %v282
    %v497 = vunpack.c.l.b16 %v283
    %v498 = vunpack.c.h.b16 %v283
    %v499 = vunpack.c.l.b16 %v284
    %v500 = vunpack.c.l.b16 %v285
    %v501 = vunpack.c.h.b16 %v285
    %v502 = vunpack.c.l.b16 %v286
    %v503 = vunpack.c.l.b16 %v287
    %v504 = vunpack.c.h.b16 %v287
    %v505 = vunpack.c.l.b16 %v288
    %v506 = vunpack.c.l.b16 %v289
    %v507 = vunpack.c.h.b16 %v289
    %v508 = vunpack.c.l.b16 %v290
    %v509 = vunpack.c.l.b16 %v291
    %v510 = vunpack.c.h.b16 %v291
    %v511 = vunpack.c.l.b16 %v292
    %v512 = vunpack.c.l.b16 %v293
    %v513 = vunpack.c.h.b16 %v293
    %v514 = vunpack.c.l.b16 %v294
    %v515 = vunpack.c.l.b16 %v295
    %v516 = vunpack.c.h.b16 %v295
    %v517 = vunpack.c.l.b16 %v296
    %v518 = vunpack.c.l.b16 %v297
    %v519 = vunpack.c.h.b16 %v297
    %v520 = vunpack.c.l.b16 %v298
    %v521 = vunpack.c.l.b16 %v299
    %v522 = vunpack.c.h.b16 %v299
    %v523 = vunpack.c.l.b16 %v300
    %v524 = vunpack.c.l.b16 %v301
    %v525 = vunpack.c.h.b16 %v301
    %v526 = vunpack.c.l.b16 %v302
    %v527 = vunpack.c.l.b16 %v303
    %v528 = vunpack.c.h.b16 %v303
    %v529 = vunpack.c.l.b16 %v304
    %v530 = vunpack.c.l.b16 %v305
    %v531 = vunpack.c.h.b16 %v305
    %v532 = vunpack.c.l.b16 %v306
    %v533 = vunpack.c.l.b16 %v307
    %v534 = vunpack.c.h.b16 %v307
    %v535 = vunpack.c.l.b16 %v308
    %v536 = vunpack.c.l.b16 %v309
    %v537 = vunpack.c.h.b16 %v309
    %v538 = vunpack.c.l.b16 %v310
    %v539 = vunpack.c.l.b16 %v311
    %v540 = vunpack.c.h.b16 %v311
    %v541 = vunpack.c.l.b16 %v312
    %v542 = vunpack.c.l.b16 %v313
    %v543 = vunpack.c.h.b16 %v313
    %v544 = vunpack.c.l.b16 %v314
    %v545 = vunpack.c.l.b16 %v315
    %v546 = vunpack.c.h.b16 %v315
    %v547 = vunpack.c.l.b16 %v316
    %v548 = vunpack.c.l.b16 %v317
    %v549 = vunpack.c.h.b16 %v317
    %v550 = vunpack.c.l.b16 %v318
    %v551 = vunpack.c.l.b16 %v319
    %v552 = vunpack.c.h.b16 %v319
    %v553 = vunpack.c.l.b16 %v320
    %v554 = vunpack.c.l.b16 %v321
    %v555 = vunpack.c.h.b16 %v321
    %v556 = vunpack.c.l.b16 %v322
    %v557 = vunpack.c.l.b16 %v323
    %v558 = vunpack.c.h.b16 %v323
    %v559 = vunpack.c.l.b16 %v324
    %v560 = vunpack.c.l.b16 %v325
    %v561 = vunpack.c.h.b16 %v325
    %v562 = vunpack.c.l.b16 %v326
    %v563 = vunpack.c.l.b16 %v327
    %v564 = vunpack.c.h.b16 %v327
    %v565 = vunpack.c.l.b16 %v328
    %v566 = vunpack.c.l.b16 %v329
    %v567 = vunpack.c.h.b16 %v329
    %v568 = vunpack.c.l.b16 %v330
    %v569 = vunpack.c.l.b16 %v331
    %v570 = vunpack.c.h.b16 %v331
    %v571 = vunpack.c.l.b16 %v332
    %v572 = vunpack.c.l.b16 %v333
    %v573 = vunpack.c.h.b16 %v333
    %v574 = vunpack.c.l.b16 %v334
    %v575 = vunpack.c.l.b16 %v335
    %v576 = vunpack.c.h.b16 %v335
    %v577 = vunpack.c.l.b16 %v336
    %v578 = vunpack.c.l.b16 %v337
    %v579 = vunpack.c.h.b16 %v337
    %v580 = vunpack.c.l.b16 %v338
    %v581 = vunpack.c.l.b16 %v339
    %v582 = vunpack.c.h.b16 %v339
    %v583 = vunpack.c.l.b16 %v340
    %v584 = vunpack.c.l.b16 %v341
    %v585 = vunpack.c.h.b16 %v341
    %v586 = vunpack.c.l.b16 %v342
    %v587 = vunpack.c.l.b16 %v343
    %v588 = vunpack.c.h.b16 %v343
    %v589 = vunpack.c.l.b16 %v344
    %v590 = vunpack.c.l.b16 %v345
    %v591 = vunpack.c.h.b16 %v345
    %v592 = vunpack.c.l.b16 %v346
    %v593 = vunpack.c.l.b16 %v347
    %v594 = vunpack.c.h.b16 %v347
    %v595 = vunpack.c.l.b16 %v348
    %v596 = vunpack.c.l.b16 %v349
    %v597 = vunpack.c.h.b16 %v349
    %v598 = vunpack.c.l.b16 %v350
    %v599 = vunpack.c.l.b16 %v351
    %v600 = vunpack.c.h.b16 %v351
    %v601 = vunpack.c.l.b16 %v352
    %v602 = vunpack.c.l.b16 %v353
    %v603 = vunpack.c.h.b16 %v353
    %v604 = vunpack.c.l.b16 %v354
    %v605 = vunpack.c.l.b16 %v355
    %v606 = vunpack.c.h.b16 %v355
    %v607 = vunpack.c.l.b16 %v356
    %v608 = vunpack.c.l.b16 %v357
    %v609 = vunpack.c.h.b16 %v357
    %v610 = vunpack.c.l.b16 %v358
    %v611 = vunpack.c.l.b16 %v359
    %v612 = vunpack.c.h.b16 %v359
    %v613 = vunpack.c.l.b16 %v360
    %v614 = vunpack.c.l.b16 %v361
    %v615 = vunpack.c.h.b16 %v361
    %v616 = vunpack.c.l.b16 %v362
    %v617 = vunpack.c.l.b16 %v363
    %v618 = vunpack.c.h.b16 %v363
    %v619 = vunpack.c.l.b16 %v364
    %v620 = vunpack.c.l.b16 %v365
    %v621 = vunpack.c.h.b16 %v365
    %v622 = vunpack.c.l.b16 %v366
    %v623 = vunpack.c.l.b16 %v367
    %v624 = vunpack.c.h.b16 %v367
    %v625 = vunpack.c.l.b16 %v368
    %v626 = vunpack.c.l.b16 %v369
    %v627 = vunpack.c.h.b16 %v369
    %v628 = vunpack.c.l.b16 %v370
    %v629 = vpack.c.b16 %v482, %v479
    %v630 = vpack.c.b16 %v483, %v480
    %v631 = vpack.c.b16 %v484, %v481
    %v632 = vpack.c.b16 %v488, %v485
    %v633 = vpack.c.b16 %v489, %v486
    %v634 = vpack.c.b16 %v490, %v487
    %v635 = vpack.c.b16 %v494, %v491
    %v636 = vpack.c.b16 %v495, %v492
    %v637 = vpack.c.b16 %v496, %v493
    %v638 = vpack.c.b16 %v500, %v497
    %v639 = vpack.c.b16 %v501, %v498
    %v640 = vpack.c.b16 %v502, %v499
    %v641 = vpack.c.b16 %v506, %v503
    %v642 = vpack.c.b16 %v507, %v504
    %v643 = vpack.c.b16 %v508, %v505
    %v644 = vpack.c.b16 %v512, %v509
    %v645 = vpack.c.b16 %v513, %v510
    %v646 = vpack.c.b16 %v514, %v511
    %v647 = vpack.c.b16 %v518, %v515
    %v648 = vpack.c.b16 %v519, %v516
    %v649 = vpack.c.b16 %v520, %v517
    %v650 = vpack.c.b16 %v524, %v521
    %v651 = vpack.c.b16 %v525, %v522
    %v652 = vpack.c.b16 %v526, %v523
    %v653 = vpack.c.b16 %v530, %v527
    %v654 = vpack.c.b16 %v531, %v528
    %v655 = vpack.c.b16 %v532, %v529
    %v656 = vpack.c.b16 %v536, %v533
    %v657 = vpack.c.b16 %v537, %v534
    %v658 = vpack.c.b16 %v538, %v535
    %v659 = vpack.c.b16 %v542, %v539
    %v660 = vpack.c.b16 %v543, %v540
    %v661 = vpack.c.b16 %v544, %v541
    %v662 = vpack.c.b16 %v548, %v545
    %v663 = vpack.c.b16 %v549, %v546
    %v664 = vpack.c.b16 %v550, %v547
    %v665 = vpack.c.b16 %v554, %v551
    %v666 = vpack.c.b16 %v555, %v552
    %v667 = vpack.c.b16 %v556, %v553
    %v668 = vpack.c.b16 %v560, %v557
    %v669 = vpack.c.b16 %v561, %v558
    %v670 = vpack.c.b16 %v562, %v559
    %v671 = vpack.c.b16 %v566, %v563
    %v672 = vpack.c.b16 %v567, %v564
    %v673 = vpack.c.b16 %v568, %v565
    %v674 = vpack.c.b16 %v572, %v569
    %v675 = vpack.c.b16 %v573, %v570
    %v676 = vpack.c.b16 %v574, %v571
    %v677 = vpack.c.b16 %v578, %v575
    %v678 = vpack.c.b16 %v579, %v576
    %v679 = vpack.c.b16 %v580, %v577
    %v680 = vpack.c.b16 %v584, %v581
    %v681 = vpack.c.b16 %v585, %v582
    %v682 = vpack.c.b16 %v586, %v583
    %v683 = vpack.c.b16 %v590, %v587
    %v684 = vpack.c.b16 %v591, %v588
    %v685 = vpack.c.b16 %v592, %v589
    %v686 = vpack.c.b16 %v596, %v593
    %v687 = vpack.c.b16 %v597, %v594
    %v688 = vpack.c.b16 %v598, %v595
    %v689 = vpack.c.b16 %v602, %v599
    %v690 = vpack.c.b16 %v603, %v600
    %v691 = vpack.c.b16 %v604, %v601
    %v692 = vpack.c.b16 %v608, %v605
    %v693 = vpack.c.b16 %v609, %v606
    %v694 = vpack.c.b16 %v610, %v607
    %v695 = vpack.c.b16 %v614, %v611
    %v696 = vpack.c.b16 %v615, %v612
    %v697 = vpack.c.b16 %v616, %v613
    %v698 = vpack.c.b16 %v620, %v617
    %v699 = vpack.c.b16 %v621, %v618
    %v700 = vpack.c.b16 %v622, %v619
    %v701 = vpack.c.b16 %v626, %v623
    %v702 = vpack.c.b16 %v627, %v624
    %v703 = vpack.c.b16 %v628, %v625
    %v780 = vsel %vm193, %v270, 0
    %782 = vmatpush.bf16.msra.mxu0 %v650
    %783 = vmatpush.bf16.msra.mxu0 %v647
    %784 = vmatpush.bf16.msra.mxu0 %v644
    %785 = vmatpush.bf16.msra.mxu0 %v641
    %786 = vmatpush.bf16.msra.mxu0 %v638
    %787 = vmatpush.bf16.msra.mxu0 %v635
    %788 = vmatpush.bf16.msra.mxu0 %v632
    %789 = vmatpush.bf16.msra.mxu0 %v629
    %790 = vmatmul.bf16.gmra.mxu0 %v267
    %v791 = vpop.f32.mrf.mxu0
    %v792 = vadd.f32 %v373, %v791
    %v793 = vpop.f32.mrf.mxu0
    %794 = vdwg.mxu0
    %795 = vmatpush.bf16.msra.mxu0 %v674
    %796 = vmatpush.bf16.msra.mxu0 %v671
    %797 = vmatpush.bf16.msra.mxu0 %v668
    %798 = vmatpush.bf16.msra.mxu0 %v665
    %799 = vmatpush.bf16.msra.mxu0 %v662
    %800 = vmatpush.bf16.msra.mxu0 %v659
    %801 = vmatpush.bf16.msra.mxu0 %v656
    %802 = vmatpush.bf16.msra.mxu0 %v653
    %803 = vmatmul.bf16.gmra.mxu0 %v268
    %v804 = vpop.f32.mrf.mxu0
    %v805 = vadd.f32 %v792, %v804
    %v806 = vpop.f32.mrf.mxu0
    %807 = vdwg.mxu0
    %808 = vmatpush.bf16.msra.mxu0 %v698
    %809 = vmatpush.bf16.msra.mxu0 %v695
    %810 = vmatpush.bf16.msra.mxu0 %v692
    %811 = vmatpush.bf16.msra.mxu0 %v689
    %812 = vmatpush.bf16.msra.mxu0 %v686
    %813 = vmatpush.bf16.msra.mxu0 %v683
    %814 = vmatpush.bf16.msra.mxu0 %v680
    %815 = vmatpush.bf16.msra.mxu0 %v677
    %816 = vmatmul.bf16.gmra.mxu0 %v269
    %v817 = vpop.f32.mrf.mxu0
    %v818 = vadd.f32 %v805, %v817
    %v819 = vpop.f32.mrf.mxu0
    %820 = vdwg.mxu0
    %821 = vmatpush.bf16.msra.mxu0 0
    %822 = vmatpush.bf16.msra.mxu0 0
    %823 = vmatpush.bf16.msra.mxu0 0
    %824 = vmatpush.bf16.msra.mxu0 0
    %825 = vmatpush.bf16.msra.mxu0 0
    %826 = vmatpush.bf16.msra.mxu0 0
    %827 = vmatpush.bf16.msra.mxu0 0
    %828 = vmatpush.bf16.msra.mxu0 %v701
    %829 = vmatmul.bf16.gmra.mxu0 %v780
    %v830 = vpop.f32.mrf.mxu0
    %v831 = vadd.f32 %v818, %v830
    %v832 = vpop.f32.mrf.mxu0
    %833 = vdwg.mxu0
    %834 = vmatpush.bf16.msra.mxu0 %v651
    %835 = vmatpush.bf16.msra.mxu0 %v648
    %836 = vmatpush.bf16.msra.mxu0 %v645
    %837 = vmatpush.bf16.msra.mxu0 %v642
    %838 = vmatpush.bf16.msra.mxu0 %v639
    %839 = vmatpush.bf16.msra.mxu0 %v636
    %840 = vmatpush.bf16.msra.mxu0 %v633
    %841 = vmatpush.bf16.msra.mxu0 %v630
    %842 = vmatmul.bf16.gmra.mxu0 %v267
    %v843 = vpop.f32.mrf.mxu0
    %v844 = vadd.f32 %v374, %v843
    %v845 = vpop.f32.mrf.mxu0
    %846 = vdwg.mxu0
    %847 = vmatpush.bf16.msra.mxu0 %v675
    %848 = vmatpush.bf16.msra.mxu0 %v672
    %849 = vmatpush.bf16.msra.mxu0 %v669
    %850 = vmatpush.bf16.msra.mxu0 %v666
    %851 = vmatpush.bf16.msra.mxu0 %v663
    %852 = vmatpush.bf16.msra.mxu0 %v660
    %853 = vmatpush.bf16.msra.mxu0 %v657
    %854 = vmatpush.bf16.msra.mxu0 %v654
    %855 = vmatmul.bf16.gmra.mxu0 %v268
    %v856 = vpop.f32.mrf.mxu0
    %v857 = vadd.f32 %v844, %v856
    %v858 = vpop.f32.mrf.mxu0
    %859 = vdwg.mxu0
    %860 = vmatpush.bf16.msra.mxu0 %v699
    %861 = vmatpush.bf16.msra.mxu0 %v696
    %862 = vmatpush.bf16.msra.mxu0 %v693
    %863 = vmatpush.bf16.msra.mxu0 %v690
    %864 = vmatpush.bf16.msra.mxu0 %v687
    %865 = vmatpush.bf16.msra.mxu0 %v684
    %866 = vmatpush.bf16.msra.mxu0 %v681
    %867 = vmatpush.bf16.msra.mxu0 %v678
    %868 = vmatmul.bf16.gmra.mxu0 %v269
    %v869 = vpop.f32.mrf.mxu0
    %v870 = vadd.f32 %v857, %v869
    %v871 = vpop.f32.mrf.mxu0
    %872 = vdwg.mxu0
    %873 = vmatpush.bf16.msra.mxu0 0
    %874 = vmatpush.bf16.msra.mxu0 0
    %875 = vmatpush.bf16.msra.mxu0 0
    %876 = vmatpush.bf16.msra.mxu0 0
    %877 = vmatpush.bf16.msra.mxu0 0
    %878 = vmatpush.bf16.msra.mxu0 0
    %879 = vmatpush.bf16.msra.mxu0 0
    %880 = vmatpush.bf16.msra.mxu0 %v702
    %881 = vmatmul.bf16.gmra.mxu0 %v780
    %v882 = vpop.f32.mrf.mxu0
    %v883 = vadd.f32 %v870, %v882
    %v884 = vpop.f32.mrf.mxu0
    %885 = vdwg.mxu0
    %886 = vmatpush.bf16.msra.mxu0 %v652
    %887 = vmatpush.bf16.msra.mxu0 %v649
    %888 = vmatpush.bf16.msra.mxu0 %v646
    %889 = vmatpush.bf16.msra.mxu0 %v643
    %890 = vmatpush.bf16.msra.mxu0 %v640
    %891 = vmatpush.bf16.msra.mxu0 %v637
    %892 = vmatpush.bf16.msra.mxu0 %v634
    %893 = vmatpush.bf16.msra.mxu0 %v631
    %894 = vmatmul.bf16.gmra.mxu0 %v267
    %v895 = vpop.f32.mrf.mxu0
    %v896 = vadd.f32 %v375, %v895
    %v897 = vpop.f32.mrf.mxu0
    %898 = vdwg.mxu0
    %899 = vmatpush.bf16.msra.mxu0 %v676
    %900 = vmatpush.bf16.msra.mxu0 %v673
    %901 = vmatpush.bf16.msra.mxu0 %v670
    %902 = vmatpush.bf16.msra.mxu0 %v667
    %903 = vmatpush.bf16.msra.mxu0 %v664
    %904 = vmatpush.bf16.msra.mxu0 %v661
    %905 = vmatpush.bf16.msra.mxu0 %v658
    %906 = vmatpush.bf16.msra.mxu0 %v655
    %907 = vmatmul.bf16.gmra.mxu0 %v268
    %v908 = vpop.f32.mrf.mxu0
    %v909 = vadd.f32 %v896, %v908
    %v910 = vpop.f32.mrf.mxu0
    %911 = vdwg.mxu0
    %912 = vmatpush.bf16.msra.mxu0 %v700
    %913 = vmatpush.bf16.msra.mxu0 %v697
    %914 = vmatpush.bf16.msra.mxu0 %v694
    %915 = vmatpush.bf16.msra.mxu0 %v691
    %916 = vmatpush.bf16.msra.mxu0 %v688
    %917 = vmatpush.bf16.msra.mxu0 %v685
    %918 = vmatpush.bf16.msra.mxu0 %v682
    %919 = vmatpush.bf16.msra.mxu0 %v679
    %920 = vmatmul.bf16.gmra.mxu0 %v269
    %v921 = vpop.f32.mrf.mxu0
    %v922 = vadd.f32 %v909, %v921
    %v923 = vpop.f32.mrf.mxu0
    %924 = vdwg.mxu0
    %925 = vmatpush.bf16.msra.mxu0 0
    %926 = vmatpush.bf16.msra.mxu0 0
    %927 = vmatpush.bf16.msra.mxu0 0
    %928 = vmatpush.bf16.msra.mxu0 0
    %929 = vmatpush.bf16.msra.mxu0 0
    %930 = vmatpush.bf16.msra.mxu0 0
    %931 = vmatpush.bf16.msra.mxu0 0
    %932 = vmatpush.bf16.msra.mxu0 %v703
    %933 = vmatmul.bf16.gmra.mxu0 %v780
    %v934 = vpop.f32.mrf.mxu0
    %v935 = vadd.f32 %v922, %v934
    %v936 = vpop.f32.mrf.mxu0
    %937 = vdwg.mxu0
    %v938 = vmax.f32 %v831, 0.0
    %v939 = vmax.f32 %v883, 0.0
    %v940 = vmax.f32 %v935, 0.0
    %v941 = vld [vmem:[#allocation8] sm:$0x7]
    %v943 = vperm.slane %v941, 0
    %v944 = vperm.slane %v941, 1
    %v945 = vperm.slane %v941, 2
    %v949 = vmul.f32 %v938, %v943
    %v950 = vmul.f32 %v939, %v944
    %v951 = vmul.f32 %v940, %v945
    %v952 = vadd.f32 %v949, %v950
    %vm953 = vcmask 359424
    %v954 = vsel %vm953, %v951, 0.0
    %v955 = vadd.f32 %v952, %v954
    %956 = vadd.xlane.f32.xlu0 %v955
    %v957 = vpop.xlane.xlu0 %956
    %s958 = sld [smem:[#allocation2]]
    %v959 = vstv %s958
    %v960 = vadd.f32 %v957, %v959
    %vm961 = vcmask 7168
    %962 = vst.msk [vmem:[%s9] sm:$0xff] %vm961, %v960
    // Predicated region
    $region54: #{tpu_custom_call.1} parent=1 // pred_check
      _
    $region55: #{tpu_custom_call.1} parent=1 // pred_check_branch
      %964 = sbr.rel (0) target = $region57
    $region56: #{tpu_custom_call.1} parent=1 // pred_region
      _
    $region57: #{tpu_custom_call.1} parent=1 // pred_fallthru
      _
    // Predicated region
    $region58: #{tpu_custom_call.1} parent=1 // pred_check
      _
    $region59: #{tpu_custom_call.1} parent=1 // pred_check_branch
      %966 = sbr.rel (0) target = $region61
    $region60: #{tpu_custom_call.1} parent=1 // pred_region
      _
    $region61: #{tpu_custom_call.1} parent=1 // pred_fallthru
      _
    %967 = vsyncpa [#allocation4], 1
    %968 = vsyncpa [#allocation6], 1
    %969 = vsyncpa [#allocation9], 1

</llo_original>
